<compile_context>
chip_gen: v6e
topology: v6e:2x2x1
jax: 0.10.0
libtpu: 0.0.40
codegen_flags: <defaults>
</compile_context>

<pallas_src>
import jax
import jax.numpy as jnp
from jax.experimental import pallas as pl
from jax.experimental.pallas import tpu as pltpu


# ---------------------------------------------------------------------------
# VMEM budget (per-generation) for deciding fused vs. tiled and for
# vmem_limit_bytes.
# ---------------------------------------------------------------------------
def _vmem_budget_bytes():
    cap = None
    try:
        info = pltpu.get_tpu_info()
        cap = getattr(info, "vmem_capacity_bytes", None)
    except Exception:
        cap = None
    if not cap:
        cap = 64 * 1024 * 1024  # conservative: v7x per-core VMEM
    return int(cap * 0.7)       # leave headroom for compiler scratch


# ---------------------------------------------------------------------------
# Fused single-pass kernel: pool -> excite MLP -> gated scale, one image slab
# per grid step.  x block is (1, C, HW) resident in VMEM.
# ---------------------------------------------------------------------------
def _se_fused_kernel(x_ref, w1_ref, b1_ref, w2_ref, b2_ref, o_ref):
    x = x_ref[0]                                              # (C, HW)
    hw = x.shape[1]

    # Global average pool on the MXU (f32 accumulation, no f32 copy of x).
    ones = jnp.ones((hw, 1), dtype=x.dtype)
    pooled = jnp.dot(x, ones, preferred_element_type=jnp.float32) * (1.0 / hw)

    # conv1 (1x1): W1 @ pooled + b1, then Swish.
    h = jnp.dot(w1_ref[...].astype(jnp.float32), pooled,
                preferred_element_type=jnp.float32) + b1_ref[...]
    h = h * jax.nn.sigmoid(h)

    # conv2 (1x1): W2 @ h + b2, then Sigmoid.
    g = jnp.dot(w2_ref[...].astype(jnp.float32), h,
                preferred_element_type=jnp.float32) + b2_ref[...]
    g = jax.nn.sigmoid(g)                                     # (C, 1) f32

    # Gated scale; gate broadcasts along lanes.
    o_ref[0] = (x * g.astype(x.dtype)).astype(o_ref.dtype)


# ---------------------------------------------------------------------------
# Fallback pass 1: tiled global average pool + excite MLP -> gate[N, C, 1]
# ---------------------------------------------------------------------------
def _make_gate_kernel(total_hw, hw_tile):
    ragged = (total_hw % hw_tile) != 0
    inv_hw = 1.0 / float(total_hw)

    def gate_kernel(x_ref, w1_ref, b1_ref, w2_ref, b2_ref, g_ref, acc_ref):
        t = pl.program_id(1)

        @pl.when(t == 0)
        def _init():
            acc_ref[...] = jnp.zeros_like(acc_ref)

        x = x_ref[0]                                          # (C, hw_tile)
        if ragged:
            # Mask out-of-range lanes of the ragged last tile (their contents
            # are unspecified padding and must not pollute the sum).
            lane = (jax.lax.broadcasted_iota(jnp.int32, (1, x.shape[1]), 1)
                    + t * x.shape[1])
            x = jnp.where(lane < total_hw, x, 0)

        # Partial spatial sum on the MXU: (C, THW) @ (THW, 1) -> (C, 1), f32.
        ones = jnp.ones((x.shape[1], 1), dtype=x.dtype)
        acc_ref[...] += jnp.dot(x, ones, preferred_element_type=jnp.float32)

        @pl.when(t == pl.num_programs(1) - 1)
        def _finalize():
            pooled = acc_ref[...] * inv_hw                    # (C, 1) f32

            h = jnp.dot(w1_ref[...].astype(jnp.float32), pooled,
                        preferred_element_type=jnp.float32) + b1_ref[...]
            h = h * jax.nn.sigmoid(h)                         # Swish

            g = jnp.dot(w2_ref[...].astype(jnp.float32), h,
                        preferred_element_type=jnp.float32) + b2_ref[...]
            g_ref[...] = jax.nn.sigmoid(g)[None]              # (1, C, 1)

    return gate_kernel


# ---------------------------------------------------------------------------
# Fallback pass 2: streaming gated scale  out[n, c, s] = x[n, c, s] * gate[n, c]
# ---------------------------------------------------------------------------
def _se_scale_kernel(g_ref, x_ref, o_ref):
    g = g_ref[...].astype(x_ref.dtype)                        # (1, C, 1)
    o_ref[...] = (x_ref[...] * g).astype(o_ref.dtype)         # lane-broadcast


def _pick_hw_tile(hw, c, itemsize, target_bytes):
    """HW tile for the fallback path: a multiple of 128 lanes whose (C, tile)
    slab is <= target_bytes (>= 128).  Prefers a tile that divides HW (no
    ragged edge); otherwise the caller uses a cdiv grid + masked last tile."""
    row_bytes = max(1, c * itemsize)
    max_lanes = max(128, (target_bytes // row_bytes) // 128 * 128)
    if hw <= max_lanes:
        return hw                      # full extent: always a legal block
    if hw % 128 == 0:
        n_groups = hw // 128
        best = 128
        for g in range(1, n_groups + 1):
            if n_groups % g == 0 and g * 128 <= max_lanes:
                best = g * 128
        return best
    return max_lanes                   # ragged last tile handled by masking


def se_module_forward(x_nchw, w1, b1, w2, b2, *, fused=None, hw_tile=None):
    """x_nchw: [N, C, H, W]; w1: [Cse, C]; b1: [Cse]; w2: [C, Cse]; b2: [C]."""
    N, C, H, W = x_nchw.shape
    Cse = w1.shape[0]
    HW = H * W
    itemsize = jnp.dtype(x_nchw.dtype).itemsize

    # Free reshape: channels on sublanes, HW on lanes.  No transposes.
    x3 = x_nchw.reshape(N, C, HW)
    b1c = b1.reshape(Cse, 1).astype(jnp.float32)
    b2c = b2.reshape(C, 1).astype(jnp.float32)

    budget = _vmem_budget_bytes()
    slab = C * HW * itemsize
    w_bytes = (Cse * C + C * Cse) * jnp.dtype(w1.dtype).itemsize + (Cse + C) * 4
    # Fused needs: 2x in-slab + 2x out-slab (double buffering) + weights + margin.
    fused_need = 4 * slab + 2 * w_bytes + (2 << 20)
    if fused is None:
        fused = fused_need <= budget

    if fused:
        # ---- Single fused pass: read x once, write once -----------------------
        out = pl.pallas_call(
            _se_fused_kernel,
            out_shape=jax.ShapeDtypeStruct((N, C, HW), x_nchw.dtype),
            grid_spec=pltpu.PrefetchScalarGridSpec(
                num_scalar_prefetch=0,
                grid=(N,),
                in_specs=[
                    pl.BlockSpec((1, C, HW), lambda n: (n, 0, 0)),  # x slab
                    pl.BlockSpec((Cse, C), lambda n: (0, 0)),       # W1
                    pl.BlockSpec((Cse, 1), lambda n: (0, 0)),       # b1
                    pl.BlockSpec((C, Cse), lambda n: (0, 0)),       # W2
                    pl.BlockSpec((C, 1), lambda n: (0, 0)),         # b2
                ],
                out_specs=pl.BlockSpec((1, C, HW), lambda n: (n, 0, 0)),
            ),
            compiler_params=pltpu.CompilerParams(
                dimension_semantics=("parallel",),
                vmem_limit_bytes=budget),
        )(x3, w1, b1c, w2, b2c)
        return out.reshape(N, C, H, W)

    # ---- Fallback: tiled two-pass path (slab too large for VMEM) -------------
    # Pass 1: only the x tile is double-buffered -> bigger target.
    t1_target = min(8 << 20, budget // 4)
    # Pass 2: x tile + out tile both double-buffered -> smaller target.
    t2_target = min(4 << 20, budget // 8)
    tile1 = hw_tile if hw_tile is not None else _pick_hw_tile(HW, C, itemsize, t1_target)
    tile2 = hw_tile if hw_tile is not None else _pick_hw_tile(HW, C, itemsize, t2_target)
    n1 = pl.cdiv(HW, tile1)
    n2 = pl.cdiv(HW, tile2)

    gate = pl.pallas_call(
        _make_gate_kernel(HW, tile1),
        out_shape=jax.ShapeDtypeStruct((N, C, 1), jnp.float32),
        grid_spec=pltpu.PrefetchScalarGridSpec(
            num_scalar_prefetch=0,
            grid=(N, n1),
            in_specs=[
                pl.BlockSpec((1, C, tile1), lambda n, t: (n, 0, t)),  # x tile
                pl.BlockSpec((Cse, C), lambda n, t: (0, 0)),          # W1
                pl.BlockSpec((Cse, 1), lambda n, t: (0, 0)),          # b1
                pl.BlockSpec((C, Cse), lambda n, t: (0, 0)),          # W2
                pl.BlockSpec((C, 1), lambda n, t: (0, 0)),            # b2
            ],
            out_specs=pl.BlockSpec((1, C, 1), lambda n, t: (n, 0, 0)),
            scratch_shapes=[pltpu.VMEM((C, 1), jnp.float32)],
        ),
        compiler_params=pltpu.CompilerParams(
            dimension_semantics=("parallel", "arbitrary"),
            vmem_limit_bytes=budget),
    )(x3, w1, b1c, w2, b2c)

    out = pl.pallas_call(
        _se_scale_kernel,
        out_shape=jax.ShapeDtypeStruct((N, C, HW), x_nchw.dtype),
        grid_spec=pltpu.PrefetchScalarGridSpec(
            num_scalar_prefetch=0,
            grid=(N, n2),
            in_specs=[
                pl.BlockSpec((1, C, 1), lambda n, t: (n, 0, 0)),      # gate
                pl.BlockSpec((1, C, tile2), lambda n, t: (n, 0, t)),  # x tile
            ],
            out_specs=pl.BlockSpec((1, C, tile2), lambda n, t: (n, 0, t)),
        ),
        compiler_params=pltpu.CompilerParams(
            dimension_semantics=("parallel", "parallel"),
            vmem_limit_bytes=budget),
    )(gate, x3)

    return out.reshape(N, C, H, W)


def se_module_ref(x_nchw, w1, b1, w2, b2):
    """Pure-JAX reference matching the PyTorch module."""
    pooled = jnp.mean(x_nchw.astype(jnp.float32), axis=(2, 3))          # (N, C)
    h = pooled @ w1.T + b1                                              # (N, Cse)
    h = h * jax.nn.sigmoid(h)                                           # Swish
    g = jax.nn.sigmoid(h @ w2.T + b2)                                   # (N, C)
    return x_nchw * g.astype(x_nchw.dtype)[:, :, None, None]


if __name__ == "__main__":
    # Small shapes consistent with the module: N=2, C=16, H=W=16, se_ratio=0.25.
    N, C, H, W = 2, 16, 16, 16
    se_ratio = 0.25
    Cse = max(1, int(C * se_ratio))  # 4

    key = jax.random.PRNGKey(0)
    kx, kw1, kb1, kw2, kb2 = jax.random.split(key, 5)
    x = jax.random.normal(kx, (N, C, H, W), dtype=jnp.float32)
    # PyTorch conv weights would be [Cse, C, 1, 1] / [C, Cse, 1, 1]; squeezed to 2-D.
    w1 = jax.random.normal(kw1, (Cse, C), dtype=jnp.float32) * 0.1
    b1 = jax.random.normal(kb1, (Cse,), dtype=jnp.float32) * 0.1
    w2 = jax.random.normal(kw2, (C, Cse), dtype=jnp.float32) * 0.1
    b2 = jax.random.normal(kb2, (C,), dtype=jnp.float32) * 0.1

    ref = se_module_ref(x, w1, b1, w2, b2)

    # Fused single-pass path (auto-selected for this slab size).
    out = jax.block_until_ready(se_module_forward(x, w1, b1, w2, b2))
    assert out.shape == x.shape and out.dtype == x.dtype
    assert jnp.allclose(out, ref, atol=1e-5, rtol=1e-5), "fused path mismatch"

    # Two-pass tiled fallback (forced) with multi-tile HW reduction.
    out2 = jax.block_until_ready(
        se_module_forward(x, w1, b1, w2, b2, fused=False, hw_tile=128))
    assert jnp.allclose(out2, ref, atol=1e-5, rtol=1e-5), "tiled path mismatch"

    # Ragged HW (H*W not a multiple of the tile): exercises the masked partial
    # sum and the boundary-dropped stores in the fallback path.
    Hr, Wr = 20, 20  # HW = 400 -> tiles of 128, last tile has 16 valid lanes
    xr = jax.random.normal(kx, (N, C, Hr, Wr), dtype=jnp.float32)
    ref_r = se_module_ref(xr, w1, b1, w2, b2)
    out_r = jax.block_until_ready(
        se_module_forward(xr, w1, b1, w2, b2, fused=False, hw_tile=128))
    assert jnp.allclose(out_r, ref_r, atol=1e-5, rtol=1e-5), "ragged path mismatch"

    print("KERNEL_OK")
</pallas_src>

<mosaic_0001>
module attributes {stable_mosaic.version = 11 : i64} {
  func.func @_se_fused_kernel(%arg0: i32, %arg1: memref<1x16x256xf32, #tpu.memory_space<vmem>>, %arg2: memref<4x16xf32, #tpu.memory_space<vmem>>, %arg3: memref<4x1xf32, #tpu.memory_space<vmem>>, %arg4: memref<16x4xf32, #tpu.memory_space<vmem>>, %arg5: memref<16x1xf32, #tpu.memory_space<vmem>>, %arg6: memref<1x16x256xf32, #tpu.memory_space<vmem>>) attributes {dimension_semantics = [#tpu.dimension_semantics<parallel>], iteration_bounds = array<i64: 2>, scalar_prefetch = 0 : i64, scratch_operands = 0 : i64, tpu.core_type = #tpu.core_type<tc>, window_params = [{transform_indices = @transform_0, window_bounds = array<i64: 1, 16, 256>}, {pipeline_mode = #tpu.pipeline_mode<synchronous>, transform_indices = @transform_1, window_bounds = array<i64: 4, 16>}, {pipeline_mode = #tpu.pipeline_mode<synchronous>, transform_indices = @transform_2, window_bounds = array<i64: 4, 1>}, {pipeline_mode = #tpu.pipeline_mode<synchronous>, transform_indices = @transform_3, window_bounds = array<i64: 16, 4>}, {pipeline_mode = #tpu.pipeline_mode<synchronous>, transform_indices = @transform_4, window_bounds = array<i64: 16, 1>}, {transform_indices = @transform_5, window_bounds = array<i64: 1, 16, 256>}]} {
    %c0 = arith.constant 0 : index
    %c0_0 = arith.constant 0 : index
    %c0_1 = arith.constant 0 : index
    %0 = vector.load %arg1[%c0, %c0_0, %c0_1] : memref<1x16x256xf32, #tpu.memory_space<vmem>>, vector<1x16x256xf32>
    %1 = vector.shape_cast %0 : vector<1x16x256xf32> to vector<16x256xf32>
    %cst = arith.constant 1.000000e+00 : f32
    %2 = vector.broadcast %cst : f32 to vector<256x1xf32>
    %cst_2 = arith.constant dense<0.000000e+00> : vector<16x1xf32>
    %3 = tpu.matmul %1, %2, %cst_2 {dimension_numbers = #tpu.dot_dimension_numbers<[1], [0], [0], [1], [0, 0, 1, 1], [], []>} : vector<16x256xf32>, vector<256x1xf32>, vector<16x1xf32> -> vector<16x1xf32>
    %cst_3 = arith.constant 3.906250e-03 : f32
    %4 = vector.broadcast %cst_3 : f32 to vector<16x1xf32>
    %5 = arith.mulf %3, %4 : vector<16x1xf32>
    %c0_4 = arith.constant 0 : index
    %c0_5 = arith.constant 0 : index
    %6 = vector.load %arg2[%c0_4, %c0_5] : memref<4x16xf32, #tpu.memory_space<vmem>>, vector<4x16xf32>
    %cst_6 = arith.constant dense<0.000000e+00> : vector<4x1xf32>
    %7 = tpu.matmul %6, %5, %cst_6 {dimension_numbers = #tpu.dot_dimension_numbers<[1], [0], [0], [1], [0, 0, 1, 1], [], []>} : vector<4x16xf32>, vector<16x1xf32>, vector<4x1xf32> -> vector<4x1xf32>
    %c0_7 = arith.constant 0 : index
    %c0_8 = arith.constant 0 : index
    %8 = vector.load %arg3[%c0_7, %c0_8] : memref<4x1xf32, #tpu.memory_space<vmem>>, vector<4x1xf32>
    %9 = arith.addf %7, %8 : vector<4x1xf32>
    %10 = arith.negf %9 : vector<4x1xf32>
    %11 = math.exp %10 : vector<4x1xf32>
    %cst_9 = arith.constant 1.000000e+00 : f32
    %12 = vector.broadcast %cst_9 : f32 to vector<4x1xf32>
    %13 = arith.addf %12, %11 : vector<4x1xf32>
    %14 = arith.divf %12, %13 : vector<4x1xf32>
    %15 = arith.mulf %9, %14 : vector<4x1xf32>
    %c0_10 = arith.constant 0 : index
    %c0_11 = arith.constant 0 : index
    %16 = vector.load %arg4[%c0_10, %c0_11] : memref<16x4xf32, #tpu.memory_space<vmem>>, vector<16x4xf32>
    %cst_12 = arith.constant dense<0.000000e+00> : vector<16x1xf32>
    %17 = tpu.matmul %16, %15, %cst_12 {dimension_numbers = #tpu.dot_dimension_numbers<[1], [0], [0], [1], [0, 0, 1, 1], [], []>} : vector<16x4xf32>, vector<4x1xf32>, vector<16x1xf32> -> vector<16x1xf32>
    %c0_13 = arith.constant 0 : index
    %c0_14 = arith.constant 0 : index
    %18 = vector.load %arg5[%c0_13, %c0_14] : memref<16x1xf32, #tpu.memory_space<vmem>>, vector<16x1xf32>
    %19 = arith.addf %17, %18 : vector<16x1xf32>
    %20 = arith.negf %19 : vector<16x1xf32>
    %21 = math.exp %20 : vector<16x1xf32>
    %cst_15 = arith.constant 1.000000e+00 : f32
    %22 = vector.broadcast %cst_15 : f32 to vector<16x1xf32>
    %23 = arith.addf %22, %21 : vector<16x1xf32>
    %24 = arith.divf %22, %23 : vector<16x1xf32>
    %25 = vector.broadcast %24 : vector<16x1xf32> to vector<16x256xf32>
    %26 = arith.mulf %1, %25 : vector<16x256xf32>
    %c0_16 = arith.constant 0 : index
    %c0_17 = arith.constant 0 : index
    %c0_18 = arith.constant 0 : index
    %27 = vector.load %arg6[%c0_16, %c0_17, %c0_18] : memref<1x16x256xf32, #tpu.memory_space<vmem>>, vector<1x16x256xf32>
    %28 = vector.shape_cast %27 : vector<1x16x256xf32> to vector<16x256xf32>
    %29 = vector.shape_cast %26 : vector<16x256xf32> to vector<1x16x256xf32>
    tpu.vector_store %arg6[%c0_16, %c0_17, %c0_18], %29 {strides = array<i32>} : memref<1x16x256xf32, #tpu.memory_space<vmem>>, vector<1x16x256xf32>,
    return
  }
  func.func @transform_0(%arg0: i32) -> (i32, i32, i32) {
    %c0_i32 = arith.constant 0 : i32
    %c0_i32_0 = arith.constant 0 : i32
    %c0_i32_1 = arith.constant 0 : i32
    return %arg0, %c0_i32, %c0_i32_0 : i32, i32, i32
  }
  func.func @transform_1(%arg0: i32) -> (i32, i32) {
    %c0_i32 = arith.constant 0 : i32
    %c0_i32_0 = arith.constant 0 : i32
    %c0_i32_1 = arith.constant 0 : i32
    return %c0_i32, %c0_i32_0 : i32, i32
  }
  func.func @transform_2(%arg0: i32) -> (i32, i32) {
    %c0_i32 = arith.constant 0 : i32
    %c0_i32_0 = arith.constant 0 : i32
    %c0_i32_1 = arith.constant 0 : i32
    return %c0_i32, %c0_i32_0 : i32, i32
  }
  func.func @transform_3(%arg0: i32) -> (i32, i32) {
    %c0_i32 = arith.constant 0 : i32
    %c0_i32_0 = arith.constant 0 : i32
    %c0_i32_1 = arith.constant 0 : i32
    return %c0_i32, %c0_i32_0 : i32, i32
  }
  func.func @transform_4(%arg0: i32) -> (i32, i32) {
    %c0_i32 = arith.constant 0 : i32
    %c0_i32_0 = arith.constant 0 : i32
    %c0_i32_1 = arith.constant 0 : i32
    return %c0_i32, %c0_i32_0 : i32, i32
  }
  func.func @transform_5(%arg0: i32) -> (i32, i32, i32) {
    %c0_i32 = arith.constant 0 : i32
    %c0_i32_0 = arith.constant 0 : i32
    %c0_i32_1 = arith.constant 0 : i32
    return %arg0, %c0_i32, %c0_i32_0 : i32, i32, i32
  }
}

</mosaic_0001>

<llo_original>
// kernel: tpu_custom_call.1
$region0: #{tpu_custom_call.1}
  #allocation0 [shape = 'u32[]', space=smem, size = 0x4, offset = 0x4, fixed_abs, tag = 'smem constant byte address 0x4 - core index']
  #allocation1 [shape = 'u32[144,128]{1,0:T(1,128)}', space=vmem, size = 0x12000, scoped, tag = 'internal scratch']
  %s0 = inlined_call_operand.hbm [shape: f32[2,16,256], index: 0, kind: input, shape index: {}]
  %s1 = inlined_call_operand.vmem [shape: f32[4,16], index: 1, kind: input, shape index: {}]
  %s2 = inlined_call_operand.vmem [shape: f32[4,1], index: 2, kind: input, shape index: {}]
  %s3 = inlined_call_operand.vmem [shape: f32[16,4], index: 3, kind: input, shape index: {}]
  %s4 = inlined_call_operand.vmem [shape: f32[16,1], index: 4, kind: input, shape index: {}]
  %s5 = inlined_call_operand.hbm [shape: f32[2,16,256], index: 5, kind: output, shape index: {}]
  %s6 = sld [smem:[#allocation0]]
  $region57: #{tpu_custom_call.1} parent=0
    _
  %s8 = ssub.s32 1, %s6
  %s9 = scalar_select 0, %s8, %s6
  $region1: #{tpu_custom_call.1} parent=0
    #allocation2 [shape = 'u8[32768]{0}', space=vmem, size = 0x8000, scoped, tag = 'input window, operand 0']
    #allocation3 [shape = 's32[2]{0}', space=sflag, size = 0x8, scoped, tag = 'scoped memory for tpu_custom_call.1']
    #allocation4 [shape = 's32[2]{0}', space=sflag, size = 0x8, scoped, tag = 'scoped memory for tpu_custom_call.1']
    #allocation5 [shape = 'u8[32768]{0}', space=vmem, size = 0x8000, scoped, tag = 'output window, operand 0']
    %10 = vsyncpa [#allocation3], 0
    %s11 = scalar_lea.sflag [#allocation3], 1
    %12 = vsyncpa %s11, 0
    %13 = vsyncpa [#allocation4], 0
    %s14 = scalar_lea.sflag [#allocation4], 1
    %15 = vsyncpa %s14, 0
    loop: start=0, step=1, limit=4
    $region2: #{tpu_custom_call.1} parent=1 // loop_pre_header
      _
    $region3: #{tpu_custom_call.1} parent=1 // loop_header
      %s17 = sphi 0, %s21
      %p18 = scmp.ge.s32.totalorder %s17, 4
      %s27 = sphi 0, %s29
      %s30 = sphi 0, %s27
      %s31 = sphi 0, %s30
      %s47 = sphi 0, %s31
      %s51 = sphi 0, %s51
      %s53 = sphi 0, %s51
      %s54 = sphi 0, %s53
      %s68 = sphi 0, %s54
      %s72 = sphi 0, %s72
      %s74 = sphi 0, %s72
      %s75 = sphi 0, %s74
      %s89 = sphi 0, %s75
      %s93 = sphi 0, %s93
      %s95 = sphi 0, %s93
      %s96 = sphi 0, %s95
      %s110 = sphi 0, %s96
      %s114 = sphi 0, %s114
      %s116 = sphi 0, %s114
      %s117 = sphi 0, %s116
      %s131 = sphi 0, %s117
      %s137 = sphi 0, %s139
      %s140 = sphi 0, %s137
      %s141 = sphi 0, %s140
      %s157 = sphi 0, %s141
    $region4: #{tpu_custom_call.1} parent=1 // loop_header_branch
      %20 = sbr.rel (%p18) target = $region8
    $region5: #{tpu_custom_call.1} parent=1 // loop_body
      %s22 = ssub.s32 %s17, 1
      %s23 = ssub.s32 %s17, 2
      %s24 = sadd.s32 %s17, 1
      %s25 = ssub.s32 %s17, %s24
      %p26 = scmp.eq.s32.totalorder %s25, 0
      %s28 = sadd.s32 %s27, 1
      %s29 = scalar_select %p26, %s27, %s28
      %p32 = pneg %p26
      %p33 = scmp.eq.s32.totalorder %s17, 1
      %p34 = por %p32, %p33
      %p35 = scmp.ne.s32.totalorder %s27, %s30
      %p36 = scmp.eq.s32.totalorder %s17, 0
      %p37 = por %p35, %p36
      %p38 = scmp.ne.s32.totalorder %s27, %s30
      %p39 = scmp.eq.s32.totalorder %s22, 1
      %p40 = por %p38, %p39
      %p41 = scmp.ne.s32.totalorder %s30, %s31
      %p42 = scmp.eq.s32.totalorder %s22, 0
      %p43 = por %p41, %p42
      %p44 = scmp.ne.s32.totalorder %s30, %s31
      %p45 = scmp.eq.s32.totalorder %s23, 1
      %p46 = por %p44, %p45
      %p48 = scmp.ne.s32.totalorder %s31, %s47
      %p49 = scmp.eq.s32.totalorder %s23, 0
      %p50 = por %p48, %p49
      %s52 = sadd.s32 %s51, 1
      %p55 = scmp.eq.s32.totalorder %s17, 1
      %p56 = scmp.ne.s32.totalorder %s51, %s53
      %p57 = scmp.eq.s32.totalorder %s17, 0
      %p58 = por %p56, %p57
      %p59 = scmp.ne.s32.totalorder %s51, %s53
      %p60 = scmp.eq.s32.totalorder %s22, 1
      %p61 = por %p59, %p60
      %p62 = scmp.ne.s32.totalorder %s53, %s54
      %p63 = scmp.eq.s32.totalorder %s22, 0
      %p64 = por %p62, %p63
      %p65 = scmp.ne.s32.totalorder %s53, %s54
      %p66 = scmp.eq.s32.totalorder %s23, 1
      %p67 = por %p65, %p66
      %p69 = scmp.ne.s32.totalorder %s54, %s68
      %p70 = scmp.eq.s32.totalorder %s23, 0
      %p71 = por %p69, %p70
      %s73 = sadd.s32 %s72, 1
      %p76 = scmp.eq.s32.totalorder %s17, 1
      %p77 = scmp.ne.s32.totalorder %s72, %s74
      %p78 = scmp.eq.s32.totalorder %s17, 0
      %p79 = por %p77, %p78
      %p80 = scmp.ne.s32.totalorder %s72, %s74
      %p81 = scmp.eq.s32.totalorder %s22, 1
      %p82 = por %p80, %p81
      %p83 = scmp.ne.s32.totalorder %s74, %s75
      %p84 = scmp.eq.s32.totalorder %s22, 0
      %p85 = por %p83, %p84
      %p86 = scmp.ne.s32.totalorder %s74, %s75
      %p87 = scmp.eq.s32.totalorder %s23, 1
      %p88 = por %p86, %p87
      %p90 = scmp.ne.s32.totalorder %s75, %s89
      %p91 = scmp.eq.s32.totalorder %s23, 0
      %p92 = por %p90, %p91
      %s94 = sadd.s32 %s93, 1
      %p97 = scmp.eq.s32.totalorder %s17, 1
      %p98 = scmp.ne.s32.totalorder %s93, %s95
      %p99 = scmp.eq.s32.totalorder %s17, 0
      %p100 = por %p98, %p99
      %p101 = scmp.ne.s32.totalorder %s93, %s95
      %p102 = scmp.eq.s32.totalorder %s22, 1
      %p103 = por %p101, %p102
      %p104 = scmp.ne.s32.totalorder %s95, %s96
      %p105 = scmp.eq.s32.totalorder %s22, 0
      %p106 = por %p104, %p105
      %p107 = scmp.ne.s32.totalorder %s95, %s96
      %p108 = scmp.eq.s32.totalorder %s23, 1
      %p109 = por %p107, %p108
      %p111 = scmp.ne.s32.totalorder %s96, %s110
      %p112 = scmp.eq.s32.totalorder %s23, 0
      %p113 = por %p111, %p112
      %s115 = sadd.s32 %s114, 1
      %p118 = scmp.eq.s32.totalorder %s17, 1
      %p119 = scmp.ne.s32.totalorder %s114, %s116
      %p120 = scmp.eq.s32.totalorder %s17, 0
      %p121 = por %p119, %p120
      %p122 = scmp.ne.s32.totalorder %s114, %s116
      %p123 = scmp.eq.s32.totalorder %s22, 1
      %p124 = por %p122, %p123
      %p125 = scmp.ne.s32.totalorder %s116, %s117
      %p126 = scmp.eq.s32.totalorder %s22, 0
      %p127 = por %p125, %p126
      %p128 = scmp.ne.s32.totalorder %s116, %s117
      %p129 = scmp.eq.s32.totalorder %s23, 1
      %p130 = por %p128, %p129
      %p132 = scmp.ne.s32.totalorder %s117, %s131
      %p133 = scmp.eq.s32.totalorder %s23, 0
      %p134 = por %p132, %p133
      %s135 = ssub.s32 %s17, %s24
      %p136 = scmp.eq.s32.totalorder %s135, 0
      %s138 = sadd.s32 %s137, 1
      %s139 = scalar_select %p136, %s137, %s138
      %p142 = pneg %p136
      %p143 = scmp.eq.s32.totalorder %s17, 1
      %p144 = por %p142, %p143
      %p145 = scmp.ne.s32.totalorder %s137, %s140
      %p146 = scmp.eq.s32.totalorder %s17, 0
      %p147 = por %p145, %p146
      %p148 = scmp.ne.s32.totalorder %s137, %s140
      %p149 = scmp.eq.s32.totalorder %s22, 1
      %p150 = por %p148, %p149
      %p151 = scmp.ne.s32.totalorder %s140, %s141
      %p152 = scmp.eq.s32.totalorder %s22, 0
      %p153 = por %p151, %p152
      %p154 = scmp.ne.s32.totalorder %s140, %s141
      %p155 = scmp.eq.s32.totalorder %s23, 1
      %p156 = por %p154, %p155
      %p158 = scmp.ne.s32.totalorder %s141, %s157
      %p159 = scmp.eq.s32.totalorder %s23, 0
      %p160 = por %p158, %p159
      %p161 = scmp.le.s32.totalorder 1, %s17
      %p162 = scmp.lt.s32.totalorder %s17, 3
      %p163 = pnand %p161, %p162
      %p164 = pneg %p163
      // Predicated region
      $region9: #{tpu_custom_call.1} parent=5 // pred_check
        _
      $region10: #{tpu_custom_call.1} parent=5 // pred_check_branch
        %166 = sbr.rel (%p163) target = $region12
      $region11: #{tpu_custom_call.1} parent=5 // pred_region
        %s167 = ssub.s32 %s17, 1
        // Predicated region
        $region13: #{tpu_custom_call.1} parent=11 // pred_check
          %p168 = pneg %p64
        $region14: #{tpu_custom_call.1} parent=11 // pred_check_branch
          %170 = sbr.rel (%p168) target = $region16
        $region15: #{tpu_custom_call.1} parent=11 // pred_region
          _
        $region16: #{tpu_custom_call.1} parent=11 // pred_fallthru
          _
        // Predicated region
        $region17: #{tpu_custom_call.1} parent=11 // pred_check
          %p171 = pneg %p85
        $region18: #{tpu_custom_call.1} parent=11 // pred_check_branch
          %173 = sbr.rel (%p171) target = $region20
        $region19: #{tpu_custom_call.1} parent=11 // pred_region
          _
        $region20: #{tpu_custom_call.1} parent=11 // pred_fallthru
          _
        // Predicated region
        $region21: #{tpu_custom_call.1} parent=11 // pred_check
          %p174 = pneg %p106
        $region22: #{tpu_custom_call.1} parent=11 // pred_check_branch
          %176 = sbr.rel (%p174) target = $region24
        $region23: #{tpu_custom_call.1} parent=11 // pred_region
          _
        $region24: #{tpu_custom_call.1} parent=11 // pred_fallthru
          _
        // Predicated region
        $region25: #{tpu_custom_call.1} parent=11 // pred_check
          %p177 = pneg %p127
        $region26: #{tpu_custom_call.1} parent=11 // pred_check_branch
          %179 = sbr.rel (%p177) target = $region28
        $region27: #{tpu_custom_call.1} parent=11 // pred_region
          _
        $region28: #{tpu_custom_call.1} parent=11 // pred_fallthru
          _
      $region12: #{tpu_custom_call.1} parent=5 // pred_fallthru
        _
      %p180 = scmp.lt.s32.totalorder %s17, 2
      // Predicated region
      $region29: #{tpu_custom_call.1} parent=5 // pred_check
        %p181 = pneg %p180
      $region30: #{tpu_custom_call.1} parent=5 // pred_check_branch
        %183 = sbr.rel (%p181) target = $region32
      $region31: #{tpu_custom_call.1} parent=5 // pred_region
        // Predicated region
        $region33: #{tpu_custom_call.1} parent=31 // pred_check
          %p184 = pneg %p37
        $region34: #{tpu_custom_call.1} parent=31 // pred_check_branch
          %186 = sbr.rel (%p184) target = $region36
        $region35: #{tpu_custom_call.1} parent=31 // pred_region
          %s187 = sand.u32 %s27, 1
          %s188 = scalar_lea.sflag [#allocation3], %s187
          %s189 = sand.u32 %s27, 1
          %s190 = smul.addr %s189, 32
          %s191 = scalar_lea.vmem [#allocation2], %s190
          %s193 = ssub.s32 512, 512
          %194 = vsyncadd %s188, %s193
          %s195 = smul.addr %s17, 4
          %s196 = smul.addr %s195, 128
          %s197 = scalar_lea.hbm %s0, %s196
          %s198 = sshll.u32 %s191, 4
          %s199 = int_to_ptr.vmem [resolvable:$true] %s198
          %204 = dma.hbm_to_vmem [thread:$0]  %s197, 512, %s199, %s188, 256, 256, 16
        $region36: #{tpu_custom_call.1} parent=31 // pred_fallthru
          _
      $region32: #{tpu_custom_call.1} parent=5 // pred_fallthru
        _
      %p205 = scmp.le.s32.totalorder 1, %s17
      %p206 = scmp.lt.s32.totalorder %s17, 3
      %p207 = pnand %p205, %p206
      %p208 = pneg %p207
      // Predicated region
      $region37: #{tpu_custom_call.1} parent=5 // pred_check
        _
      $region38: #{tpu_custom_call.1} parent=5 // pred_check_branch
        %210 = sbr.rel (%p207) target = $region40
      $region39: #{tpu_custom_call.1} parent=5 // pred_region
        %s211 = ssub.s32 %s17, 1
        %s212 = sand.u32 %s30, 1
        %s213 = scalar_lea.sflag [#allocation3], %s212
        %s214 = sand.u32 %s30, 1
        %s215 = smul.addr %s214, 32
        %s216 = scalar_lea.vmem [#allocation2], %s215
        // Predicated region
        $region41: #{tpu_custom_call.1} parent=39 // pred_check
          %p217 = pneg %p43
        $region42: #{tpu_custom_call.1} parent=39 // pred_check_branch
          %219 = sbr.rel (%p217) target = $region44
        $region43: #{tpu_custom_call.1} parent=39 // pred_region
          %220 = dma.done %s213, 512
        $region44: #{tpu_custom_call.1} parent=39 // pred_fallthru
          _
        %s221 = sand.u32 %s30, 1
        %s222 = scalar_lea.sflag [#allocation3], %s221
        %s223 = sand.u32 %s30, 1
        %s224 = smul.addr %s223, 32
        %s225 = scalar_lea.vmem [#allocation2], %s224
        %p226 = pneg %p43
        %p227 = pneg %p40
        %p228 = pneg %p64
        %p229 = pneg %p61
        %p230 = pneg %p85
        %p231 = pneg %p82
        %p232 = pneg %p106
        %p233 = pneg %p103
        %p234 = pneg %p127
        %p235 = pneg %p124
        %p236 = pneg %p153
        %p237 = pneg %p150
        %s238 = sand.u32 %s140, 1
        %s239 = scalar_lea.sflag [#allocation4], %s238
        %s240 = sand.u32 %s140, 1
        %s241 = smul.addr %s240, 32
        %s242 = scalar_lea.vmem [#allocation5], %s241
        %v243 = vld [vmem:[%s216] sm:$0xff]
        %v244 = vld [vmem:[%s216 + $0x8] sm:$0xff]
        %v245 = vld [vmem:[%s216 + $0x10] sm:$0xff]
        %v246 = vld [vmem:[%s216 + $0x18] sm:$0xff]
        %247 = vmatprep.subr.mxu0 0.0
        %248 = vmatpush1.msra.mxu0 1.0
        %249 = vmatprep.subr.mxu0 0.0
        %250 = vmatpush1.msra.mxu0 1.0
        %251 = vmatprep.subr.mxu0 0.0
        %252 = vmatpush1.msra.mxu0 1.0
        %253 = vmatprep.subr.mxu0 0.0
        %254 = vmatpush1.msra.mxu0 1.0
        %255 = vmatprep.subr.mxu0 0.0
        %256 = vmatpush1.msra.mxu0 1.0
        %257 = vmatprep.subr.mxu0 0.0
        %258 = vmatpush1.msra.mxu0 1.0
        %259 = vmatprep.subr.mxu0 0.0
        %260 = vmatpush1.msra.mxu0 1.0
        %261 = vmatprep.subr.mxu0 0.0
        %262 = vmatpush1.msra.mxu0 1.0
        %263 = vmatprep.subr.mxu0 0.0
        %264 = vmatpush1.msra.mxu0 1.0
        %265 = vmatprep.subr.mxu0 0.0
        %266 = vmatpush1.msra.mxu0 1.0
        %267 = vmatprep.subr.mxu0 0.0
        %268 = vmatpush1.msra.mxu0 1.0
        %269 = vmatprep.subr.mxu0 0.0
        %270 = vmatpush1.msra.mxu0 1.0
        %271 = vmatprep.subr.mxu0 0.0
        %272 = vmatpush1.msra.mxu0 1.0
        %273 = vmatprep.subr.mxu0 0.0
        %274 = vmatpush1.msra.mxu0 1.0
        %275 = vmatprep.subr.mxu0 0.0
        %276 = vmatpush1.msra.mxu0 1.0
        %277 = vmatprep.subr.mxu0 0.0
        %278 = vmatpush1.msra.mxu0 1.0
        %279 = vmatprep.subr.mxu0 0.0
        %280 = vmatpush2.msra.mxu0 1.0
        %281 = vmatprep.subr.mxu0 0.0
        %282 = vmatpush2.msra.mxu0 1.0
        %283 = vmatprep.subr.mxu0 0.0
        %284 = vmatpush2.msra.mxu0 1.0
        %285 = vmatprep.subr.mxu0 0.0
        %286 = vmatpush2.msra.mxu0 1.0
        %287 = vmatprep.subr.mxu0 0.0
        %288 = vmatpush2.msra.mxu0 1.0
        %289 = vmatprep.subr.mxu0 0.0
        %290 = vmatpush2.msra.mxu0 1.0
        %291 = vmatprep.subr.mxu0 0.0
        %292 = vmatpush2.msra.mxu0 1.0
        %293 = vmatprep.subr.mxu0 0.0
        %294 = vmatpush2.msra.mxu0 1.0
        %295 = vmatprep.subr.mxu0 0.0
        %296 = vmatpush2.msra.mxu0 1.0
        %297 = vmatprep.subr.mxu0 0.0
        %298 = vmatpush2.msra.mxu0 1.0
        %299 = vmatprep.subr.mxu0 0.0
        %300 = vmatpush2.msra.mxu0 1.0
        %301 = vmatprep.subr.mxu0 0.0
        %302 = vmatpush2.msra.mxu0 1.0
        %303 = vmatprep.subr.mxu0 0.0
        %304 = vmatpush2.msra.mxu0 1.0
        %305 = vmatprep.subr.mxu0 0.0
        %306 = vmatpush2.msra.mxu0 1.0
        %307 = vmatprep.subr.mxu0 0.0
        %308 = vmatpush2.msra.mxu0 1.0
        %309 = vmatprep.subr.mxu0 0.0
        %310 = vmatpush2.msra.mxu0 1.0
        %311 = vmatprep.mubr.f32.mxu0 %v244
        %312 = vmatmul.mubr.f32.gmra.mxu0 %v243
        %v313 = vpop.f32.mrf.mxu0
        %v314 = vadd.f32 0.0, %v313
        %v315 = vpop.f32.mrf.mxu0
        %316 = vmatprep.mubr.f32.mxu0 %v246
        %317 = vmatmul.mubr.f32.gmra.mxu0 %v245
        %v318 = vpop.f32.mrf.mxu0
        %v319 = vadd.f32 0.0, %v318
        %v320 = vpop.f32.mrf.mxu0
        %321 = vdwg.mxu0
        %v322 = vmul.f32 %v314, 0.00390625
        %v323 = vmul.f32 %v319, 0.00390625
        %v324 = vld [vmem:[%s1] sm:$0xf]
        %v325 = vld [vmem:[%s2] sm:$0xf]
        %vm326 = vcmask 130048
        %v328 = vsel %vm326, %v324, 0
        %330 = vmatprep.subr.mxu0 0.0
        %331 = vmatpush1.msra.mxu0 0.0
        %332 = vmatprep.subr.mxu0 0.0
        %333 = vmatpush1.msra.mxu0 0.0
        %334 = vmatprep.subr.mxu0 0.0
        %335 = vmatpush1.msra.mxu0 0.0
        %336 = vmatprep.subr.mxu0 0.0
        %337 = vmatpush1.msra.mxu0 0.0
        %338 = vmatprep.subr.mxu0 0.0
        %339 = vmatpush1.msra.mxu0 0.0
        %340 = vmatprep.subr.mxu0 0.0
        %341 = vmatpush1.msra.mxu0 0.0
        %342 = vmatprep.subr.mxu0 0.0
        %343 = vmatpush1.msra.mxu0 0.0
        %344 = vmatprep.subr.mxu0 0.0
        %345 = vmatpush1.msra.mxu0 0.0
        %346 = vmatprep.subr.mxu0 0.0
        %347 = vmatpush1.msra.mxu0 0.0
        %348 = vmatprep.subr.mxu0 0.0
        %349 = vmatpush1.msra.mxu0 0.0
        %350 = vmatprep.subr.mxu0 0.0
        %351 = vmatpush1.msra.mxu0 0.0
        %352 = vmatprep.subr.mxu0 0.0
        %353 = vmatpush1.msra.mxu0 0.0
        %354 = vmatprep.subr.mxu0 0.0
        %355 = vmatpush1.msra.mxu0 0.0
        %356 = vmatprep.subr.mxu0 0.0
        %357 = vmatpush1.msra.mxu0 0.0
        %358 = vmatprep.subr.mxu0 0.0
        %359 = vmatpush1.msra.mxu0 %v323
        %360 = vmatprep.subr.mxu0 0.0
        %361 = vmatpush1.msra.mxu0 %v322
        %362 = vmatprep.subr.mxu0 0.0
        %363 = vmatpush2.msra.mxu0 0.0
        %364 = vmatprep.subr.mxu0 0.0
        %365 = vmatpush2.msra.mxu0 0.0
        %366 = vmatprep.subr.mxu0 0.0
        %367 = vmatpush2.msra.mxu0 0.0
        %368 = vmatprep.subr.mxu0 0.0
        %369 = vmatpush2.msra.mxu0 0.0
        %370 = vmatprep.subr.mxu0 0.0
        %371 = vmatpush2.msra.mxu0 0.0
        %372 = vmatprep.subr.mxu0 0.0
        %373 = vmatpush2.msra.mxu0 0.0
        %374 = vmatprep.subr.mxu0 0.0
        %375 = vmatpush2.msra.mxu0 0.0
        %376 = vmatprep.subr.mxu0 0.0
        %377 = vmatpush2.msra.mxu0 0.0
        %378 = vmatprep.subr.mxu0 0.0
        %379 = vmatpush2.msra.mxu0 0.0
        %380 = vmatprep.subr.mxu0 0.0
        %381 = vmatpush2.msra.mxu0 0.0
        %382 = vmatprep.subr.mxu0 0.0
        %383 = vmatpush2.msra.mxu0 0.0
        %384 = vmatprep.subr.mxu0 0.0
        %385 = vmatpush2.msra.mxu0 0.0
        %386 = vmatprep.subr.mxu0 0.0
        %387 = vmatpush2.msra.mxu0 0.0
        %388 = vmatprep.subr.mxu0 0.0
        %389 = vmatpush2.msra.mxu0 0.0
        %390 = vmatprep.subr.mxu0 0.0
        %391 = vmatpush2.msra.mxu0 0.0
        %392 = vmatprep.subr.mxu0 0.0
        %393 = vmatpush2.msra.mxu0 0.0
        %394 = vmatprep.mubr.f32.mxu0 0.0
        %395 = vmatmul.mubr.f32.gmra.mxu0 %v328
        %v396 = vpop.f32.mrf.mxu0
        %v397 = vadd.f32 %v325, %v396
        %v398 = vpop.f32.mrf.mxu0
        %399 = vdwg.mxu0
        %v400 = vxor.u32 %v397, 2147483648
        %v401 = vmul.f32 %v400, 1.442695
        %v402 = vpow.pop %v401
        %v403 = vadd.f32 %v402, 1.0
        %v404 = vrcp.pop %v403
        %v405 = vmul.f32 1.0, %v404
        %v406 = vmul.f32 %v397, %v405
        %v407 = vld [vmem:[%s3] sm:$0xff]
        %v408 = vld [vmem:[%s3 + $0x8] sm:$0xff]
        %v409 = vld [vmem:[%s4] sm:$0xff]
        %v410 = vld [vmem:[%s4 + $0x8] sm:$0xff]
        %vm411 = vcmask 31744
        %v413 = vsel %vm411, %v407, 0
        %v416 = vsel %vm411, %v408, 0
        %vm418 = vcmask 1043456
        %v420 = vsel %vm418, %v406, 0
        %422 = vmatprep.subr.mxu0 0.0
        %423 = vmatpush1.msra.mxu0 0.0
        %424 = vmatprep.subr.mxu0 0.0
        %425 = vmatpush1.msra.mxu0 0.0
        %426 = vmatprep.subr.mxu0 0.0
        %427 = vmatpush1.msra.mxu0 0.0
        %428 = vmatprep.subr.mxu0 0.0
        %429 = vmatpush1.msra.mxu0 0.0
        %430 = vmatprep.subr.mxu0 0.0
        %431 = vmatpush1.msra.mxu0 0.0
        %432 = vmatprep.subr.mxu0 0.0
        %433 = vmatpush1.msra.mxu0 0.0
        %434 = vmatprep.subr.mxu0 0.0
        %435 = vmatpush1.msra.mxu0 0.0
        %436 = vmatprep.subr.mxu0 0.0
        %437 = vmatpush1.msra.mxu0 0.0
        %438 = vmatprep.subr.mxu0 0.0
        %439 = vmatpush1.msra.mxu0 0.0
        %440 = vmatprep.subr.mxu0 0.0
        %441 = vmatpush1.msra.mxu0 0.0
        %442 = vmatprep.subr.mxu0 0.0
        %443 = vmatpush1.msra.mxu0 0.0
        %444 = vmatprep.subr.mxu0 0.0
        %445 = vmatpush1.msra.mxu0 0.0
        %446 = vmatprep.subr.mxu0 0.0
        %447 = vmatpush1.msra.mxu0 0.0
        %448 = vmatprep.subr.mxu0 0.0
        %449 = vmatpush1.msra.mxu0 0.0
        %450 = vmatprep.subr.mxu0 0.0
        %451 = vmatpush1.msra.mxu0 0.0
        %452 = vmatprep.subr.mxu0 0.0
        %453 = vmatpush1.msra.mxu0 %v420
        %454 = vmatprep.subr.mxu0 0.0
        %455 = vmatpush2.msra.mxu0 0.0
        %456 = vmatprep.subr.mxu0 0.0
        %457 = vmatpush2.msra.mxu0 0.0
        %458 = vmatprep.subr.mxu0 0.0
        %459 = vmatpush2.msra.mxu0 0.0
        %460 = vmatprep.subr.mxu0 0.0
        %461 = vmatpush2.msra.mxu0 0.0
        %462 = vmatprep.subr.mxu0 0.0
        %463 = vmatpush2.msra.mxu0 0.0
        %464 = vmatprep.subr.mxu0 0.0
        %465 = vmatpush2.msra.mxu0 0.0
        %466 = vmatprep.subr.mxu0 0.0
        %467 = vmatpush2.msra.mxu0 0.0
        %468 = vmatprep.subr.mxu0 0.0
        %469 = vmatpush2.msra.mxu0 0.0
        %470 = vmatprep.subr.mxu0 0.0
        %471 = vmatpush2.msra.mxu0 0.0
        %472 = vmatprep.subr.mxu0 0.0
        %473 = vmatpush2.msra.mxu0 0.0
        %474 = vmatprep.subr.mxu0 0.0
        %475 = vmatpush2.msra.mxu0 0.0
        %476 = vmatprep.subr.mxu0 0.0
        %477 = vmatpush2.msra.mxu0 0.0
        %478 = vmatprep.subr.mxu0 0.0
        %479 = vmatpush2.msra.mxu0 0.0
        %480 = vmatprep.subr.mxu0 0.0
        %481 = vmatpush2.msra.mxu0 0.0
        %482 = vmatprep.subr.mxu0 0.0
        %483 = vmatpush2.msra.mxu0 0.0
        %484 = vmatprep.subr.mxu0 0.0
        %485 = vmatpush2.msra.mxu0 0.0
        %486 = vmatprep.mubr.f32.mxu0 0.0
        %487 = vmatmul.mubr.f32.gmra.mxu0 %v413
        %v488 = vpop.f32.mrf.mxu0
        %v489 = vadd.f32 %v409, %v488
        %v490 = vpop.f32.mrf.mxu0
        %491 = vmatprep.mubr.f32.mxu0 0.0
        %492 = vmatmul.mubr.f32.gmra.mxu0 %v416
        %v493 = vpop.f32.mrf.mxu0
        %v494 = vadd.f32 %v410, %v493
        %v495 = vpop.f32.mrf.mxu0
        %496 = vdwg.mxu0
        %v497 = vxor.u32 %v489, 2147483648
        %v498 = vxor.u32 %v494, 2147483648
        %v499 = vmul.f32 %v497, 1.442695
        %v500 = vpow.pop %v499
        %v501 = vmul.f32 %v498, 1.442695
        %v502 = vpow.pop %v501
        %v503 = vadd.f32 %v500, 1.0
        %v504 = vadd.f32 %v502, 1.0
        %v505 = vrcp.pop %v503
        %v506 = vmul.f32 1.0, %v505
        %v507 = vrcp.pop %v504
        %v508 = vmul.f32 1.0, %v507
        %510 = vset.pattern.permute.xlu0 0
        %511 = vperm.xlu0 %510, %v506
        %v512 = vpop.permute.xlu0 %511
        %515 = vset.pattern.permute.xlu0 0
        %516 = vperm.xlu0 %515, %v508
        %v517 = vpop.permute.xlu0 %516
        %v519 = vmul.f32 %v243, %v512
        %v520 = vmul.f32 %v244, %v512
        %v521 = vmul.f32 %v245, %v517
        %v522 = vmul.f32 %v246, %v517
        %523 = vst [vmem:[%s242] sm:$0xff] %v519
        %524 = vst [vmem:[%s242 + $0x8] sm:$0xff] %v520
        %525 = vst [vmem:[%s242 + $0x10] sm:$0xff] %v521
        %526 = vst [vmem:[%s242 + $0x18] sm:$0xff] %v522
        %s527 = sand.u32 %s140, 1
        %s528 = scalar_lea.sflag [#allocation4], %s527
        %s529 = sand.u32 %s140, 1
        %s530 = smul.addr %s529, 32
        %s531 = scalar_lea.vmem [#allocation5], %s530
        // Predicated region
        $region45: #{tpu_custom_call.1} parent=39 // pred_check
          %p532 = pneg %p150
        $region46: #{tpu_custom_call.1} parent=39 // pred_check_branch
          %534 = sbr.rel (%p532) target = $region48
        $region47: #{tpu_custom_call.1} parent=39 // pred_region
          %s536 = ssub.s32 512, 512
          %537 = vsyncadd %s528, %s536
          %s538 = smul.addr %s22, 4
          %s539 = smul.addr %s538, 128
          %s540 = scalar_lea.hbm %s5, %s539
          %s541 = sshll.u32 %s531, 4
          %s542 = int_to_ptr.vmem [resolvable:$true] %s541
          %547 = dma.vmem_to_hbm [thread:$0]  %s542, 512, %s540, %s528, 256, 256, 16
        $region48: #{tpu_custom_call.1} parent=39 // pred_fallthru
          _
      $region40: #{tpu_custom_call.1} parent=5 // pred_fallthru
        _
      %p548 = scmp.le.s32.totalorder 2, %s17
      // Predicated region
      $region49: #{tpu_custom_call.1} parent=5 // pred_check
        %p549 = pneg %p548
      $region50: #{tpu_custom_call.1} parent=5 // pred_check_branch
        %551 = sbr.rel (%p549) target = $region52
      $region51: #{tpu_custom_call.1} parent=5 // pred_region
        %s552 = ssub.s32 %s17, 2
        // Predicated region
        $region53: #{tpu_custom_call.1} parent=51 // pred_check
          %p553 = pneg %p156
        $region54: #{tpu_custom_call.1} parent=51 // pred_check_branch
          %555 = sbr.rel (%p553) target = $region56
        $region55: #{tpu_custom_call.1} parent=51 // pred_region
          %s556 = sand.u32 %s141, 1
          %s557 = scalar_lea.sflag [#allocation4], %s556
          %s558 = sand.u32 %s141, 1
          %s559 = smul.addr %s558, 32
          %s560 = scalar_lea.vmem [#allocation5], %s559
          %561 = dma.done %s557, 512
        $region56: #{tpu_custom_call.1} parent=51 // pred_fallthru
          _
      $region52: #{tpu_custom_call.1} parent=5 // pred_fallthru
        _
    $region6: #{tpu_custom_call.1} parent=1 // loop_footer
      %s21 = sadd.s32 1, %s17
    $region7: #{tpu_custom_call.1} parent=1 // loop_footer_branch
      %16 = sbr.rel target = $region3
    $region8: #{tpu_custom_call.1} parent=1 // loop_exit
      _
    %562 = vsyncpa [#allocation3], 1
    %s563 = scalar_lea.sflag [#allocation3], 1
    %564 = vsyncpa %s563, 1
    %565 = vsyncpa [#allocation4], 1
    %s566 = scalar_lea.sflag [#allocation4], 1
    %567 = vsyncpa %s566, 1

</llo_original>
